<compile_context>
chip_gen: v5e
topology: v5e:2x2
jax: 0.10.0
libtpu: 0.0.40
codegen_flags: <defaults>
</compile_context>

<pallas_src>
import math

import jax
import jax.numpy as jnp
from jax.experimental import pallas as pl
from jax.experimental.pallas import tpu as pltpu


def _fourier_kernel(w_ref, x_ref, o_ref):
    # w_ref: (n_half, C)  f32   -- already scaled by 2*pi
    # x_ref: (C, TM)      f32   -- column block of the transposed input
    # o_ref: (out, TM)    f32   -- cos rows [0, n_half), sin rows [n_half, out)
    n_half = w_ref.shape[0]
    f = jnp.dot(w_ref[...], x_ref[...], preferred_element_type=jnp.float32)
    o_ref[:n_half, :] = jnp.cos(f)
    o_ref[n_half:, :] = jnp.sin(f)


def fourier_features(x, weight, *, tile_m=4096):
    """x: (C, H, W) float32, weight: (out/2, C) float32 -> (out, H, W)."""
    C, H, W = x.shape
    n_half, in_features = weight.shape
    assert in_features == C
    out_features = 2 * n_half
    M = H * W

    # torch .view(H*W, C) on a contiguous (C,H,W) tensor is a raw reshape.
    # Transpose it to (C, M) so the kernel's output blocks are lane-dense
    # (out, TM); this input-side transpose is out/C times cheaper than
    # transposing the output would be.
    x_t = x.reshape(M, C).astype(jnp.float32).T  # (C, M)

    # Fold the 2*pi scale into the tiny weight (wrapper-side, free).
    w2pi = (2.0 * math.pi) * weight.astype(jnp.float32)  # (n_half, C)

    # Lane tile: multiple of 128, capped by the problem size and a VMEM-safe
    # default (double-buffered footprint ~ 2*TM*(C + out)*4 B, tiny even on
    # v7x's 64 MiB VMEM at these feature counts).
    TM = min(tile_m, max(128, pl.cdiv(M, 128) * 128))
    TM = pl.cdiv(TM, 128) * 128
    Mp = pl.cdiv(M, TM) * TM
    if Mp != M:
        x_t = jnp.pad(x_t, ((0, 0), (0, Mp - M)))

    out2d = pl.pallas_call(
        _fourier_kernel,
        out_shape=jax.ShapeDtypeStruct((out_features, Mp), jnp.float32),
        grid_spec=pltpu.PrefetchScalarGridSpec(
            num_scalar_prefetch=0,
            grid=(Mp // TM,),
            in_specs=[
                pl.BlockSpec((n_half, C), lambda i: (0, 0)),  # weight, resident
                pl.BlockSpec((C, TM), lambda i: (0, i)),      # input columns
            ],
            out_specs=pl.BlockSpec((out_features, TM), lambda i: (0, i)),
        ),
        compiler_params=pltpu.CompilerParams(
            dimension_semantics=("parallel",),  # shard M over TCs on v7x
        ),
        cost_estimate=pl.CostEstimate(
            flops=2 * M * C * n_half,
            transcendentals=2 * M * n_half,
            bytes_accessed=4 * (M * C + n_half * C + M * out_features),
        ),
    )(w2pi, x_t)

    if Mp != M:
        out2d = out2d[:, :M]
    # Already (out, M) with M = H*W in row-major order -> free reshape.
    return out2d.reshape(out_features, H, W)


def fourier_features_ref(x, weight):
    """Pure-JAX reference mirroring the PyTorch forward exactly."""
    C, H, W = x.shape
    x_r = x.reshape(H * W, C)
    f = 2.0 * math.pi * (x_r @ weight.T)
    ff = jnp.concatenate([jnp.cos(f), jnp.sin(f)], axis=-1).reshape(H, W, -1)
    return jnp.transpose(ff, (2, 0, 1))


if __name__ == "__main__":
    in_features = 4
    out_features = 16
    std = 1.0
    H = W = 16

    key = jax.random.PRNGKey(0)
    kx, kw = jax.random.split(key)
    x = jax.random.normal(kx, (in_features, H, W), dtype=jnp.float32)
    weight = jax.random.normal(
        kw, (out_features // 2, in_features), dtype=jnp.float32
    ) * std

    out = fourier_features(x, weight)
    out = jax.block_until_ready(out)

    ref = fourier_features_ref(x, weight)
    assert out.shape == (out_features, H, W), out.shape
    assert jnp.allclose(out, ref, atol=2e-5, rtol=2e-5), "mismatch vs reference"

    print("KERNEL_OK")
</pallas_src>

<mosaic_0001>
module attributes {stable_mosaic.version = 11 : i64} {
  func.func @_fourier_kernel(%arg0: i32, %arg1: memref<8x4xf32, #tpu.memory_space<vmem>>, %arg2: memref<4x256xf32, #tpu.memory_space<vmem>>, %arg3: memref<16x256xf32, #tpu.memory_space<vmem>>) attributes {dimension_semantics = [#tpu.dimension_semantics<parallel>], iteration_bounds = array<i64: 1>, scalar_prefetch = 0 : i64, scratch_operands = 0 : i64, tpu.core_type = #tpu.core_type<tc>, window_params = [{pipeline_mode = #tpu.pipeline_mode<synchronous>, transform_indices = @transform_0, window_bounds = array<i64: 8, 4>}, {transform_indices = @transform_1, window_bounds = array<i64: 4, 256>}, {transform_indices = @transform_2, window_bounds = array<i64: 16, 256>}]} {
    %c0 = arith.constant 0 : index
    %c0_0 = arith.constant 0 : index
    %0 = vector.load %arg1[%c0, %c0_0] : memref<8x4xf32, #tpu.memory_space<vmem>>, vector<8x4xf32>
    %c0_1 = arith.constant 0 : index
    %c0_2 = arith.constant 0 : index
    %1 = vector.load %arg2[%c0_1, %c0_2] : memref<4x256xf32, #tpu.memory_space<vmem>>, vector<4x256xf32>
    %cst = arith.constant dense<0.000000e+00> : vector<8x256xf32>
    %2 = tpu.matmul %0, %1, %cst {dimension_numbers = #tpu.dot_dimension_numbers<[1], [0], [0], [1], [0, 0, 1, 1], [], []>} : vector<8x4xf32>, vector<4x256xf32>, vector<8x256xf32> -> vector<8x256xf32>
    %3 = math.cos %2 : vector<8x256xf32>
    %c0_3 = arith.constant 0 : index
    %c0_4 = arith.constant 0 : index
    %4 = vector.load %arg3[%c0_3, %c0_4] : memref<16x256xf32, #tpu.memory_space<vmem>>, vector<8x256xf32>
    tpu.vector_store %arg3[%c0_3, %c0_4], %3 {strides = array<i32>} : memref<16x256xf32, #tpu.memory_space<vmem>>, vector<8x256xf32>,
    %5 = math.sin %2 : vector<8x256xf32>
    %c8 = arith.constant 8 : index
    %c0_5 = arith.constant 0 : index
    %6 = vector.load %arg3[%c8, %c0_5] : memref<16x256xf32, #tpu.memory_space<vmem>>, vector<8x256xf32>
    tpu.vector_store %arg3[%c8, %c0_5], %5 {strides = array<i32>} : memref<16x256xf32, #tpu.memory_space<vmem>>, vector<8x256xf32>,
    return
  }
  func.func @transform_0(%arg0: i32) -> (i32, i32) {
    %c0_i32 = arith.constant 0 : i32
    %c0_i32_0 = arith.constant 0 : i32
    %c0_i32_1 = arith.constant 0 : i32
    return %c0_i32, %c0_i32_0 : i32, i32
  }
  func.func @transform_1(%arg0: i32) -> (i32, i32) {
    %c0_i32 = arith.constant 0 : i32
    %c0_i32_0 = arith.constant 0 : i32
    return %c0_i32, %arg0 : i32, i32
  }
  func.func @transform_2(%arg0: i32) -> (i32, i32) {
    %c0_i32 = arith.constant 0 : i32
    %c0_i32_0 = arith.constant 0 : i32
    return %c0_i32, %arg0 : i32, i32
  }
}

</mosaic_0001>

<llo_original>
// kernel: tpu_custom_call.1
$region0: #{tpu_custom_call.1}
  #allocation0 [shape = 'u32[]', space=smem, size = 0x4, offset = 0x4, fixed_abs, tag = 'smem constant byte address 0x4 - core index']
  #allocation1 [shape = 'u32[72,128]{1,0:T(1,128)}', space=vmem, size = 0x9000, scoped, tag = 'internal scratch']
  %s0 = inlined_call_operand.vmem [shape: f32[8,4], index: 0, kind: input, shape index: {}]
  %s1 = inlined_call_operand.vmem [shape: f32[4,256], index: 1, kind: input, shape index: {}]
  %s2 = inlined_call_operand.hbm [shape: f32[16,256], index: 2, kind: output, shape index: {}]
  %s3 = sld [smem:[#allocation0]]
  $region18: #{tpu_custom_call.1} parent=0
    _
  %s5 = ssub.s32 1, %s3
  %s6 = scalar_select 0, %s5, %s3
  $region1: #{tpu_custom_call.1} parent=0
    #allocation2 [shape = 'u8[16384]{0}', space=vmem, size = 0x4000, scoped, tag = 'output window, operand 0, single buffered']
    #allocation3 [shape = 's32[1]{0}', space=sflag, size = 0x4, scoped, tag = 'scoped memory for tpu_custom_call.1']
    %7 = vsyncpa [#allocation3], 0
    // Predicated region
    $region2: #{tpu_custom_call.1} parent=1 // pred_check
      _
    $region3: #{tpu_custom_call.1} parent=1 // pred_check_branch
      %9 = sbr.rel (0) target = $region5
    $region4: #{tpu_custom_call.1} parent=1 // pred_region
      _
    $region5: #{tpu_custom_call.1} parent=1 // pred_fallthru
      _
    // Predicated region
    $region6: #{tpu_custom_call.1} parent=1 // pred_check
      _
    $region7: #{tpu_custom_call.1} parent=1 // pred_check_branch
      %11 = sbr.rel (0) target = $region9
    $region8: #{tpu_custom_call.1} parent=1 // pred_region
      _
    $region9: #{tpu_custom_call.1} parent=1 // pred_fallthru
      _
    %v12 = vld [vmem:[%s0] sm:$0xff]
    %v13 = vld [vmem:[%s1] sm:$0xff]
    %15 = vst [vmem:[#allocation1] ss:$2 sm:$0xff] %v13
    %v16 = vld.sshfl [vmem:[#allocation1] sm:$0xff pattern:$0x75316420]
    %v17 = vld.sshfl [vmem:[#allocation1 + $0x8] sm:$0xff pattern:$0x75316420]
    %vm18 = vcmask 31744
    %v20 = vsel %vm18, %v12, 0
    %vm22 = vcmask 1043456
    %v23 = vsel %vm22, %v16, 0
    %v25 = vsel %vm22, %v17, 0
    %27 = vmatpush.msra.mxu0 0.0
    %28 = vmatpush.msra.mxu0 0.0
    %29 = vmatpush.msra.mxu0 0.0
    %30 = vmatpush.msra.mxu0 0.0
    %31 = vmatpush.msra.mxu0 0.0
    %32 = vmatpush.msra.mxu0 0.0
    %33 = vmatpush.msra.mxu0 0.0
    %34 = vmatpush.msra.mxu0 0.0
    %35 = vmatpush.msra.mxu0 0.0
    %36 = vmatpush.msra.mxu0 0.0
    %37 = vmatpush.msra.mxu0 0.0
    %38 = vmatpush.msra.mxu0 0.0
    %39 = vmatpush.msra.mxu0 0.0
    %40 = vmatpush.msra.mxu0 0.0
    %41 = vmatpush.msra.mxu0 0.0
    %42 = vmatpush.msra.mxu0 %v23
    %43 = vmatmul.f32.gmra.mxu0 %v20
    %v44 = vpop.f32.mrf.mxu0
    %v45 = vadd.f32 0.0, %v44
    %46 = vdwg.mxu0
    %47 = vmatpush.msra.mxu0 0.0
    %48 = vmatpush.msra.mxu0 0.0
    %49 = vmatpush.msra.mxu0 0.0
    %50 = vmatpush.msra.mxu0 0.0
    %51 = vmatpush.msra.mxu0 0.0
    %52 = vmatpush.msra.mxu0 0.0
    %53 = vmatpush.msra.mxu0 0.0
    %54 = vmatpush.msra.mxu0 0.0
    %55 = vmatpush.msra.mxu0 0.0
    %56 = vmatpush.msra.mxu0 0.0
    %57 = vmatpush.msra.mxu0 0.0
    %58 = vmatpush.msra.mxu0 0.0
    %59 = vmatpush.msra.mxu0 0.0
    %60 = vmatpush.msra.mxu0 0.0
    %61 = vmatpush.msra.mxu0 0.0
    %62 = vmatpush.msra.mxu0 %v25
    %63 = vmatmul.f32.gmra.mxu0 %v20
    %v64 = vpop.f32.mrf.mxu0
    %v65 = vadd.f32 0.0, %v64
    %66 = vdwg.mxu0
    %v67 = vand.u32 2147483647, %v45
    %vm68 = vcmp.le.f32.partialorder %v67, 0.7853982
    %vm69 = vcmp.lt.s32.totalorder %v45, 0
    %v70 = vand.u32 %v45, 2139095040
    %v71 = vshrl.u32 %v70, 23
    %v72 = vsub.s32 %v71, 127
    %v73 = vand.u32 2147483647, %v45
    %v74 = vand.u32 %v73, 8388607
    %v75 = vor.u32 %v74, 8388608
    %v76 = vsub.s32 0, %v75
    %v77 = vadd.s32 %v72, 1
    %vm78 = vcmp.gt.s32.totalorder %v77, 0
    %v79 = vsel %vm78, %v77, 0
    %v80 = vshrl.u32 %v79, 5
    %v81 = vand.u32 %v79, 31
    %v82 = vsub.s32 32, %v81
    %v83 = vshrl.u32 683565275, %v82
    %v84 = vshll.u32 683565275, %v81
    %v85 = vshrl.u32 2475754826, %v82
    %v86 = vor.u32 %v84, %v85
    %v87 = vshll.u32 2475754826, %v81
    %v88 = vshrl.u32 2131351028, %v82
    %v89 = vor.u32 %v87, %v88
    %v90 = vshll.u32 2131351028, %v81
    %v91 = vshrl.u32 2102212464, %v82
    %v92 = vor.u32 %v90, %v91
    %v93 = vshll.u32 2102212464, %v81
    %v94 = vshrl.u32 920167782, %v82
    %v95 = vor.u32 %v93, %v94
    %v96 = vshll.u32 920167782, %v81
    %v97 = vshrl.u32 1326507024, %v82
    %v98 = vor.u32 %v96, %v97
    %vm99 = vcmp.lt.s32.totalorder %v80, 1
    %vm100 = vcmp.lt.s32.totalorder %v80, 2
    %vm101 = vcmp.lt.s32.totalorder %v80, 3
    %vm102 = vcmp.lt.s32.totalorder %v80, 4
    %v103 = vsel %vm99, %v83, %v86
    %v104 = vsel %vm102, %v92, 2102212464
    %v105 = vsel %vm101, %v89, %v104
    %v106 = vsel %vm100, %v103, %v105
    %v107 = vsel %vm99, %v86, %v89
    %v108 = vsel %vm102, %v95, 920167782
    %v109 = vsel %vm101, %v92, %v108
    %v110 = vsel %vm100, %v107, %v109
    %v111 = vsel %vm99, %v89, %v92
    %v112 = vsel %vm102, %v98, 1326507024
    %v113 = vsel %vm101, %v95, %v112
    %v114 = vsel %vm100, %v111, %v113
    %v115 = vshll.u32 %v75, 8
    %v116 = vand.u32 %v115, 65535
    %v117 = vshrl.u32 %v115, 16
    %v118 = vand.u32 %v114, 65535
    %v119 = vshrl.u32 %v114, 16
    %v120 = vmul.u32 %v116, %v118
    %v121 = vmul.u32 %v116, %v119
    %v122 = vmul.u32 %v117, %v118
    %v123 = vmul.u32 %v117, %v119
    %v124 = vshll.u32 %v121, 16
    %v125 = vshrl.u32 %v121, 16
    %v126 = vshll.u32 %v122, 16
    %v127 = vshrl.u32 %v122, 16
    %vm128 = vc.u32 %v120, %v124
    %v129 = vsel %vm128, 1, 0
    %v130 = vadd.s32 %v120, %v124
    %v131 = vadd.s32 %v123, %v129
    %vm132 = vc.u32 %v130, %v126
    %v133 = vsel %vm132, 1, 0
    %v134 = vadd.s32 %v130, %v126
    %v135 = vadd.s32 %v131, %v133
    %v136 = vadd.s32 %v135, %v125
    %v137 = vadd.s32 %v136, %v127
    %v138 = vand.u32 %v115, 65535
    %v139 = vshrl.u32 %v115, 16
    %v140 = vand.u32 %v110, 65535
    %v141 = vshrl.u32 %v110, 16
    %v142 = vmul.u32 %v138, %v140
    %v143 = vmul.u32 %v138, %v141
    %v144 = vmul.u32 %v139, %v140
    %v145 = vmul.u32 %v139, %v141
    %v146 = vshll.u32 %v143, 16
    %v147 = vshrl.u32 %v143, 16
    %v148 = vshll.u32 %v144, 16
    %v149 = vshrl.u32 %v144, 16
    %vm150 = vc.u32 %v142, %v146
    %v151 = vsel %vm150, 1, 0
    %v152 = vadd.s32 %v142, %v146
    %v153 = vadd.s32 %v145, %v151
    %vm154 = vc.u32 %v152, %v148
    %v155 = vsel %vm154, 1, 0
    %v156 = vadd.s32 %v152, %v148
    %v157 = vadd.s32 %v153, %v155
    %v158 = vadd.s32 %v157, %v147
    %v159 = vadd.s32 %v158, %v149
    %v160 = vmul.u32 %v115, %v106
    %v161 = vadd.s32 %v137, %v156
    %vm162 = vc.u32 %v137, %v156
    %v163 = vadd.s32 %v159, 1
    %v164 = vsel %vm162, %v163, %v159
    %v165 = vadd.s32 %v160, %v164
    %v166 = vadd.s32 %v165, 536870912
    %v167 = vshrl.u32 %v166, 30
    %v168 = vshll.u32 %v167, 30
    %v169 = vsub.s32 %v165, %v168
    %vm170 = vcmp.lt.s32.totalorder %v169, 0
    %v171 = vsub.s32 0, %v169
    %v172 = vsel %vm170, %v171, %v169
    %v173 = vclz %v172
    %v174 = vsub.s32 %v173, 2
    %vm175 = vcmp.gt.s32.totalorder 0, %v174
    %v176 = vsel %vm175, 0, %v174
    %v177 = vsub.s32 32, %v176
    %v178 = vshll.u32 %v169, %v176
    %v179 = vshrl.u32 %v161, %v177
    %v180 = vor.u32 %v178, %v179
    %v181 = vsub.s32 4294967266, %v176
    %v182 = vadd.s32 %v181, 127
    %v183 = vshll.u32 %v182, 23
    %v184 = vor.u32 4788187, %v183
    %v185 = vand.u32 2147483647, %v184
    %v187 = vcvt.s32.f32 %v180
    %v188 = vmul.f32 %v187, %v185
    %v189 = vxor.u32 %v188, 2147483648
    %v190 = vsel %vm69, %v189, %v188
    %v191 = vsub.s32 4, %v167
    %v192 = vsel %vm69, %v191, %v167
    %v193 = vsel %vm68, %v45, %v190
    %v194 = vsel %vm68, 0, %v192
    %v195 = vmul.f32 %v193, %v193
    %v196 = vmul.f32 %v195, -0.001358992
    %v197 = vadd.f32 %v196, 0.041655596
    %v198 = vmul.f32 %v195, %v197
    %v199 = vadd.f32 %v198, -0.4999988
    %v200 = vmul.f32 %v195, %v199
    %v201 = vadd.f32 1.0, %v200
    %v202 = vmul.f32 %v193, %v193
    %v203 = vmul.f32 %v202, -0.00019511016
    %v204 = vadd.f32 %v203, 0.008332121
    %v205 = vmul.f32 %v202, %v204
    %v206 = vadd.f32 %v205, -0.16666654
    %v207 = vmul.f32 %v202, %v206
    %v208 = vadd.f32 %v207, 1.0
    %v209 = vmul.f32 %v208, %v193
    %vm210 = vweird.f32 %v45
    %v211 = vand.u32 %v194, 3
    %vm212 = vcmp.lt.s32.totalorder %v211, 2
    %vm213 = vcmp.eq.s32.totalorder %v211, 0
    %v214 = vxor.u32 %v209, 2147483648
    %v215 = vsel %vm213, %v201, %v214
    %vm216 = vcmp.eq.s32.totalorder %v211, 2
    %v217 = vxor.u32 %v201, 2147483648
    %v218 = vsel %vm216, %v217, %v209
    %v219 = vsel %vm212, %v215, %v218
    %v220 = vsel %vm210, nan, %v219
    %v221 = vand.u32 2147483647, %v65
    %vm222 = vcmp.le.f32.partialorder %v221, 0.7853982
    %vm223 = vcmp.lt.s32.totalorder %v65, 0
    %v224 = vand.u32 %v65, 2139095040
    %v225 = vshrl.u32 %v224, 23
    %v226 = vsub.s32 %v225, 127
    %v227 = vand.u32 2147483647, %v65
    %v228 = vand.u32 %v227, 8388607
    %v229 = vor.u32 %v228, 8388608
    %v230 = vsub.s32 0, %v229
    %v231 = vadd.s32 %v226, 1
    %vm232 = vcmp.gt.s32.totalorder %v231, 0
    %v233 = vsel %vm232, %v231, 0
    %v234 = vshrl.u32 %v233, 5
    %v235 = vand.u32 %v233, 31
    %v236 = vsub.s32 32, %v235
    %v237 = vshrl.u32 683565275, %v236
    %v238 = vshll.u32 683565275, %v235
    %v239 = vshrl.u32 2475754826, %v236
    %v240 = vor.u32 %v238, %v239
    %v241 = vshll.u32 2475754826, %v235
    %v242 = vshrl.u32 2131351028, %v236
    %v243 = vor.u32 %v241, %v242
    %v244 = vshll.u32 2131351028, %v235
    %v245 = vshrl.u32 2102212464, %v236
    %v246 = vor.u32 %v244, %v245
    %v247 = vshll.u32 2102212464, %v235
    %v248 = vshrl.u32 920167782, %v236
    %v249 = vor.u32 %v247, %v248
    %v250 = vshll.u32 920167782, %v235
    %v251 = vshrl.u32 1326507024, %v236
    %v252 = vor.u32 %v250, %v251
    %vm253 = vcmp.lt.s32.totalorder %v234, 1
    %vm254 = vcmp.lt.s32.totalorder %v234, 2
    %vm255 = vcmp.lt.s32.totalorder %v234, 3
    %vm256 = vcmp.lt.s32.totalorder %v234, 4
    %v257 = vsel %vm253, %v237, %v240
    %v258 = vsel %vm256, %v246, 2102212464
    %v259 = vsel %vm255, %v243, %v258
    %v260 = vsel %vm254, %v257, %v259
    %v261 = vsel %vm253, %v240, %v243
    %v262 = vsel %vm256, %v249, 920167782
    %v263 = vsel %vm255, %v246, %v262
    %v264 = vsel %vm254, %v261, %v263
    %v265 = vsel %vm253, %v243, %v246
    %v266 = vsel %vm256, %v252, 1326507024
    %v267 = vsel %vm255, %v249, %v266
    %v268 = vsel %vm254, %v265, %v267
    %v269 = vshll.u32 %v229, 8
    %v270 = vand.u32 %v269, 65535
    %v271 = vshrl.u32 %v269, 16
    %v272 = vand.u32 %v268, 65535
    %v273 = vshrl.u32 %v268, 16
    %v274 = vmul.u32 %v270, %v272
    %v275 = vmul.u32 %v270, %v273
    %v276 = vmul.u32 %v271, %v272
    %v277 = vmul.u32 %v271, %v273
    %v278 = vshll.u32 %v275, 16
    %v279 = vshrl.u32 %v275, 16
    %v280 = vshll.u32 %v276, 16
    %v281 = vshrl.u32 %v276, 16
    %vm282 = vc.u32 %v274, %v278
    %v283 = vsel %vm282, 1, 0
    %v284 = vadd.s32 %v274, %v278
    %v285 = vadd.s32 %v277, %v283
    %vm286 = vc.u32 %v284, %v280
    %v287 = vsel %vm286, 1, 0
    %v288 = vadd.s32 %v284, %v280
    %v289 = vadd.s32 %v285, %v287
    %v290 = vadd.s32 %v289, %v279
    %v291 = vadd.s32 %v290, %v281
    %v292 = vand.u32 %v269, 65535
    %v293 = vshrl.u32 %v269, 16
    %v294 = vand.u32 %v264, 65535
    %v295 = vshrl.u32 %v264, 16
    %v296 = vmul.u32 %v292, %v294
    %v297 = vmul.u32 %v292, %v295
    %v298 = vmul.u32 %v293, %v294
    %v299 = vmul.u32 %v293, %v295
    %v300 = vshll.u32 %v297, 16
    %v301 = vshrl.u32 %v297, 16
    %v302 = vshll.u32 %v298, 16
    %v303 = vshrl.u32 %v298, 16
    %vm304 = vc.u32 %v296, %v300
    %v305 = vsel %vm304, 1, 0
    %v306 = vadd.s32 %v296, %v300
    %v307 = vadd.s32 %v299, %v305
    %vm308 = vc.u32 %v306, %v302
    %v309 = vsel %vm308, 1, 0
    %v310 = vadd.s32 %v306, %v302
    %v311 = vadd.s32 %v307, %v309
    %v312 = vadd.s32 %v311, %v301
    %v313 = vadd.s32 %v312, %v303
    %v314 = vmul.u32 %v269, %v260
    %v315 = vadd.s32 %v291, %v310
    %vm316 = vc.u32 %v291, %v310
    %v317 = vadd.s32 %v313, 1
    %v318 = vsel %vm316, %v317, %v313
    %v319 = vadd.s32 %v314, %v318
    %v320 = vadd.s32 %v319, 536870912
    %v321 = vshrl.u32 %v320, 30
    %v322 = vshll.u32 %v321, 30
    %v323 = vsub.s32 %v319, %v322
    %vm324 = vcmp.lt.s32.totalorder %v323, 0
    %v325 = vsub.s32 0, %v323
    %v326 = vsel %vm324, %v325, %v323
    %v327 = vclz %v326
    %v328 = vsub.s32 %v327, 2
    %vm329 = vcmp.gt.s32.totalorder 0, %v328
    %v330 = vsel %vm329, 0, %v328
    %v331 = vsub.s32 32, %v330
    %v332 = vshll.u32 %v323, %v330
    %v333 = vshrl.u32 %v315, %v331
    %v334 = vor.u32 %v332, %v333
    %v335 = vsub.s32 4294967266, %v330
    %v336 = vadd.s32 %v335, 127
    %v337 = vshll.u32 %v336, 23
    %v338 = vor.u32 4788187, %v337
    %v339 = vand.u32 2147483647, %v338
    %v341 = vcvt.s32.f32 %v334
    %v342 = vmul.f32 %v341, %v339
    %v343 = vxor.u32 %v342, 2147483648
    %v344 = vsel %vm223, %v343, %v342
    %v345 = vsub.s32 4, %v321
    %v346 = vsel %vm223, %v345, %v321
    %v347 = vsel %vm222, %v65, %v344
    %v348 = vsel %vm222, 0, %v346
    %v349 = vmul.f32 %v347, %v347
    %v350 = vmul.f32 %v349, -0.001358992
    %v351 = vadd.f32 %v350, 0.041655596
    %v352 = vmul.f32 %v349, %v351
    %v353 = vadd.f32 %v352, -0.4999988
    %v354 = vmul.f32 %v349, %v353
    %v355 = vadd.f32 1.0, %v354
    %v356 = vmul.f32 %v347, %v347
    %v357 = vmul.f32 %v356, -0.00019511016
    %v358 = vadd.f32 %v357, 0.008332121
    %v359 = vmul.f32 %v356, %v358
    %v360 = vadd.f32 %v359, -0.16666654
    %v361 = vmul.f32 %v356, %v360
    %v362 = vadd.f32 %v361, 1.0
    %v363 = vmul.f32 %v362, %v347
    %vm364 = vweird.f32 %v65
    %v365 = vand.u32 %v348, 3
    %vm366 = vcmp.lt.s32.totalorder %v365, 2
    %vm367 = vcmp.eq.s32.totalorder %v365, 0
    %v368 = vxor.u32 %v363, 2147483648
    %v369 = vsel %vm367, %v355, %v368
    %vm370 = vcmp.eq.s32.totalorder %v365, 2
    %v371 = vxor.u32 %v355, 2147483648
    %v372 = vsel %vm370, %v371, %v363
    %v373 = vsel %vm366, %v369, %v372
    %v374 = vsel %vm364, nan, %v373
    %375 = vst [vmem:[#allocation2] sm:$0xff] %v220
    %376 = vst [vmem:[#allocation2 + $0x8] sm:$0xff] %v374
    %v377 = vand.u32 2147483647, %v45
    %vm378 = vcmp.le.f32.partialorder %v377, 0.7853982
    %vm379 = vcmp.lt.s32.totalorder %v45, 0
    %v380 = vand.u32 %v45, 2139095040
    %v381 = vshrl.u32 %v380, 23
    %v382 = vsub.s32 %v381, 127
    %v383 = vand.u32 2147483647, %v45
    %v384 = vand.u32 %v383, 8388607
    %v385 = vor.u32 %v384, 8388608
    %v386 = vsub.s32 0, %v385
    %v387 = vadd.s32 %v382, 1
    %vm388 = vcmp.gt.s32.totalorder %v387, 0
    %v389 = vsel %vm388, %v387, 0
    %v390 = vshrl.u32 %v389, 5
    %v391 = vand.u32 %v389, 31
    %v392 = vsub.s32 32, %v391
    %v393 = vshrl.u32 683565275, %v392
    %v394 = vshll.u32 683565275, %v391
    %v395 = vshrl.u32 2475754826, %v392
    %v396 = vor.u32 %v394, %v395
    %v397 = vshll.u32 2475754826, %v391
    %v398 = vshrl.u32 2131351028, %v392
    %v399 = vor.u32 %v397, %v398
    %v400 = vshll.u32 2131351028, %v391
    %v401 = vshrl.u32 2102212464, %v392
    %v402 = vor.u32 %v400, %v401
    %v403 = vshll.u32 2102212464, %v391
    %v404 = vshrl.u32 920167782, %v392
    %v405 = vor.u32 %v403, %v404
    %v406 = vshll.u32 920167782, %v391
    %v407 = vshrl.u32 1326507024, %v392
    %v408 = vor.u32 %v406, %v407
    %vm409 = vcmp.lt.s32.totalorder %v390, 1
    %vm410 = vcmp.lt.s32.totalorder %v390, 2
    %vm411 = vcmp.lt.s32.totalorder %v390, 3
    %vm412 = vcmp.lt.s32.totalorder %v390, 4
    %v413 = vsel %vm409, %v393, %v396
    %v414 = vsel %vm412, %v402, 2102212464
    %v415 = vsel %vm411, %v399, %v414
    %v416 = vsel %vm410, %v413, %v415
    %v417 = vsel %vm409, %v396, %v399
    %v418 = vsel %vm412, %v405, 920167782
    %v419 = vsel %vm411, %v402, %v418
    %v420 = vsel %vm410, %v417, %v419
    %v421 = vsel %vm409, %v399, %v402
    %v422 = vsel %vm412, %v408, 1326507024
    %v423 = vsel %vm411, %v405, %v422
    %v424 = vsel %vm410, %v421, %v423
    %v425 = vshll.u32 %v385, 8
    %v426 = vand.u32 %v425, 65535
    %v427 = vshrl.u32 %v425, 16
    %v428 = vand.u32 %v424, 65535
    %v429 = vshrl.u32 %v424, 16
    %v430 = vmul.u32 %v426, %v428
    %v431 = vmul.u32 %v426, %v429
    %v432 = vmul.u32 %v427, %v428
    %v433 = vmul.u32 %v427, %v429
    %v434 = vshll.u32 %v431, 16
    %v435 = vshrl.u32 %v431, 16
    %v436 = vshll.u32 %v432, 16
    %v437 = vshrl.u32 %v432, 16
    %vm438 = vc.u32 %v430, %v434
    %v439 = vsel %vm438, 1, 0
    %v440 = vadd.s32 %v430, %v434
    %v441 = vadd.s32 %v433, %v439
    %vm442 = vc.u32 %v440, %v436
    %v443 = vsel %vm442, 1, 0
    %v444 = vadd.s32 %v440, %v436
    %v445 = vadd.s32 %v441, %v443
    %v446 = vadd.s32 %v445, %v435
    %v447 = vadd.s32 %v446, %v437
    %v448 = vand.u32 %v425, 65535
    %v449 = vshrl.u32 %v425, 16
    %v450 = vand.u32 %v420, 65535
    %v451 = vshrl.u32 %v420, 16
    %v452 = vmul.u32 %v448, %v450
    %v453 = vmul.u32 %v448, %v451
    %v454 = vmul.u32 %v449, %v450
    %v455 = vmul.u32 %v449, %v451
    %v456 = vshll.u32 %v453, 16
    %v457 = vshrl.u32 %v453, 16
    %v458 = vshll.u32 %v454, 16
    %v459 = vshrl.u32 %v454, 16
    %vm460 = vc.u32 %v452, %v456
    %v461 = vsel %vm460, 1, 0
    %v462 = vadd.s32 %v452, %v456
    %v463 = vadd.s32 %v455, %v461
    %vm464 = vc.u32 %v462, %v458
    %v465 = vsel %vm464, 1, 0
    %v466 = vadd.s32 %v462, %v458
    %v467 = vadd.s32 %v463, %v465
    %v468 = vadd.s32 %v467, %v457
    %v469 = vadd.s32 %v468, %v459
    %v470 = vmul.u32 %v425, %v416
    %v471 = vadd.s32 %v447, %v466
    %vm472 = vc.u32 %v447, %v466
    %v473 = vadd.s32 %v469, 1
    %v474 = vsel %vm472, %v473, %v469
    %v475 = vadd.s32 %v470, %v474
    %v476 = vadd.s32 %v475, 536870912
    %v477 = vshrl.u32 %v476, 30
    %v478 = vshll.u32 %v477, 30
    %v479 = vsub.s32 %v475, %v478
    %vm480 = vcmp.lt.s32.totalorder %v479, 0
    %v481 = vsub.s32 0, %v479
    %v482 = vsel %vm480, %v481, %v479
    %v483 = vclz %v482
    %v484 = vsub.s32 %v483, 2
    %vm485 = vcmp.gt.s32.totalorder 0, %v484
    %v486 = vsel %vm485, 0, %v484
    %v487 = vsub.s32 32, %v486
    %v488 = vshll.u32 %v479, %v486
    %v489 = vshrl.u32 %v471, %v487
    %v490 = vor.u32 %v488, %v489
    %v491 = vsub.s32 4294967266, %v486
    %v492 = vadd.s32 %v491, 127
    %v493 = vshll.u32 %v492, 23
    %v494 = vor.u32 4788187, %v493
    %v495 = vand.u32 2147483647, %v494
    %v497 = vcvt.s32.f32 %v490
    %v498 = vmul.f32 %v497, %v495
    %v499 = vxor.u32 %v498, 2147483648
    %v500 = vsel %vm379, %v499, %v498
    %v501 = vsub.s32 4, %v477
    %v502 = vsel %vm379, %v501, %v477
    %v503 = vsel %vm378, %v45, %v500
    %v504 = vsel %vm378, 0, %v502
    %v505 = vmul.f32 %v503, %v503
    %v506 = vmul.f32 %v505, -0.001358992
    %v507 = vadd.f32 %v506, 0.041655596
    %v508 = vmul.f32 %v505, %v507
    %v509 = vadd.f32 %v508, -0.4999988
    %v510 = vmul.f32 %v505, %v509
    %v511 = vadd.f32 1.0, %v510
    %v512 = vmul.f32 %v503, %v503
    %v513 = vmul.f32 %v512, -0.00019511016
    %v514 = vadd.f32 %v513, 0.008332121
    %v515 = vmul.f32 %v512, %v514
    %v516 = vadd.f32 %v515, -0.16666654
    %v517 = vmul.f32 %v512, %v516
    %v518 = vadd.f32 %v517, 1.0
    %v519 = vmul.f32 %v518, %v503
    %vm520 = vweird.f32 %v45
    %v521 = vadd.s32 %v504, 3
    %v522 = vand.u32 %v521, 3
    %vm523 = vcmp.lt.s32.totalorder %v522, 2
    %vm524 = vcmp.eq.s32.totalorder %v522, 0
    %v525 = vxor.u32 %v519, 2147483648
    %v526 = vsel %vm524, %v511, %v525
    %vm527 = vcmp.eq.s32.totalorder %v522, 2
    %v528 = vxor.u32 %v511, 2147483648
    %v529 = vsel %vm527, %v528, %v519
    %v530 = vsel %vm523, %v526, %v529
    %v531 = vsel %vm520, nan, %v530
    %v532 = vand.u32 2147483647, %v65
    %vm533 = vcmp.le.f32.partialorder %v532, 0.7853982
    %vm534 = vcmp.lt.s32.totalorder %v65, 0
    %v535 = vand.u32 %v65, 2139095040
    %v536 = vshrl.u32 %v535, 23
    %v537 = vsub.s32 %v536, 127
    %v538 = vand.u32 2147483647, %v65
    %v539 = vand.u32 %v538, 8388607
    %v540 = vor.u32 %v539, 8388608
    %v541 = vsub.s32 0, %v540
    %v542 = vadd.s32 %v537, 1
    %vm543 = vcmp.gt.s32.totalorder %v542, 0
    %v544 = vsel %vm543, %v542, 0
    %v545 = vshrl.u32 %v544, 5
    %v546 = vand.u32 %v544, 31
    %v547 = vsub.s32 32, %v546
    %v548 = vshrl.u32 683565275, %v547
    %v549 = vshll.u32 683565275, %v546
    %v550 = vshrl.u32 2475754826, %v547
    %v551 = vor.u32 %v549, %v550
    %v552 = vshll.u32 2475754826, %v546
    %v553 = vshrl.u32 2131351028, %v547
    %v554 = vor.u32 %v552, %v553
    %v555 = vshll.u32 2131351028, %v546
    %v556 = vshrl.u32 2102212464, %v547
    %v557 = vor.u32 %v555, %v556
    %v558 = vshll.u32 2102212464, %v546
    %v559 = vshrl.u32 920167782, %v547
    %v560 = vor.u32 %v558, %v559
    %v561 = vshll.u32 920167782, %v546
    %v562 = vshrl.u32 1326507024, %v547
    %v563 = vor.u32 %v561, %v562
    %vm564 = vcmp.lt.s32.totalorder %v545, 1
    %vm565 = vcmp.lt.s32.totalorder %v545, 2
    %vm566 = vcmp.lt.s32.totalorder %v545, 3
    %vm567 = vcmp.lt.s32.totalorder %v545, 4
    %v568 = vsel %vm564, %v548, %v551
    %v569 = vsel %vm567, %v557, 2102212464
    %v570 = vsel %vm566, %v554, %v569
    %v571 = vsel %vm565, %v568, %v570
    %v572 = vsel %vm564, %v551, %v554
    %v573 = vsel %vm567, %v560, 920167782
    %v574 = vsel %vm566, %v557, %v573
    %v575 = vsel %vm565, %v572, %v574
    %v576 = vsel %vm564, %v554, %v557
    %v577 = vsel %vm567, %v563, 1326507024
    %v578 = vsel %vm566, %v560, %v577
    %v579 = vsel %vm565, %v576, %v578
    %v580 = vshll.u32 %v540, 8
    %v581 = vand.u32 %v580, 65535
    %v582 = vshrl.u32 %v580, 16
    %v583 = vand.u32 %v579, 65535
    %v584 = vshrl.u32 %v579, 16
    %v585 = vmul.u32 %v581, %v583
    %v586 = vmul.u32 %v581, %v584
    %v587 = vmul.u32 %v582, %v583
    %v588 = vmul.u32 %v582, %v584
    %v589 = vshll.u32 %v586, 16
    %v590 = vshrl.u32 %v586, 16
    %v591 = vshll.u32 %v587, 16
    %v592 = vshrl.u32 %v587, 16
    %vm593 = vc.u32 %v585, %v589
    %v594 = vsel %vm593, 1, 0
    %v595 = vadd.s32 %v585, %v589
    %v596 = vadd.s32 %v588, %v594
    %vm597 = vc.u32 %v595, %v591
    %v598 = vsel %vm597, 1, 0
    %v599 = vadd.s32 %v595, %v591
    %v600 = vadd.s32 %v596, %v598
    %v601 = vadd.s32 %v600, %v590
    %v602 = vadd.s32 %v601, %v592
    %v603 = vand.u32 %v580, 65535
    %v604 = vshrl.u32 %v580, 16
    %v605 = vand.u32 %v575, 65535
    %v606 = vshrl.u32 %v575, 16
    %v607 = vmul.u32 %v603, %v605
    %v608 = vmul.u32 %v603, %v606
    %v609 = vmul.u32 %v604, %v605
    %v610 = vmul.u32 %v604, %v606
    %v611 = vshll.u32 %v608, 16
    %v612 = vshrl.u32 %v608, 16
    %v613 = vshll.u32 %v609, 16
    %v614 = vshrl.u32 %v609, 16
    %vm615 = vc.u32 %v607, %v611
    %v616 = vsel %vm615, 1, 0
    %v617 = vadd.s32 %v607, %v611
    %v618 = vadd.s32 %v610, %v616
    %vm619 = vc.u32 %v617, %v613
    %v620 = vsel %vm619, 1, 0
    %v621 = vadd.s32 %v617, %v613
    %v622 = vadd.s32 %v618, %v620
    %v623 = vadd.s32 %v622, %v612
    %v624 = vadd.s32 %v623, %v614
    %v625 = vmul.u32 %v580, %v571
    %v626 = vadd.s32 %v602, %v621
    %vm627 = vc.u32 %v602, %v621
    %v628 = vadd.s32 %v624, 1
    %v629 = vsel %vm627, %v628, %v624
    %v630 = vadd.s32 %v625, %v629
    %v631 = vadd.s32 %v630, 536870912
    %v632 = vshrl.u32 %v631, 30
    %v633 = vshll.u32 %v632, 30
    %v634 = vsub.s32 %v630, %v633
    %vm635 = vcmp.lt.s32.totalorder %v634, 0
    %v636 = vsub.s32 0, %v634
    %v637 = vsel %vm635, %v636, %v634
    %v638 = vclz %v637
    %v639 = vsub.s32 %v638, 2
    %vm640 = vcmp.gt.s32.totalorder 0, %v639
    %v641 = vsel %vm640, 0, %v639
    %v642 = vsub.s32 32, %v641
    %v643 = vshll.u32 %v634, %v641
    %v644 = vshrl.u32 %v626, %v642
    %v645 = vor.u32 %v643, %v644
    %v646 = vsub.s32 4294967266, %v641
    %v647 = vadd.s32 %v646, 127
    %v648 = vshll.u32 %v647, 23
    %v649 = vor.u32 4788187, %v648
    %v650 = vand.u32 2147483647, %v649
    %v652 = vcvt.s32.f32 %v645
    %v653 = vmul.f32 %v652, %v650
    %v654 = vxor.u32 %v653, 2147483648
    %v655 = vsel %vm534, %v654, %v653
    %v656 = vsub.s32 4, %v632
    %v657 = vsel %vm534, %v656, %v632
    %v658 = vsel %vm533, %v65, %v655
    %v659 = vsel %vm533, 0, %v657
    %v660 = vmul.f32 %v658, %v658
    %v661 = vmul.f32 %v660, -0.001358992
    %v662 = vadd.f32 %v661, 0.041655596
    %v663 = vmul.f32 %v660, %v662
    %v664 = vadd.f32 %v663, -0.4999988
    %v665 = vmul.f32 %v660, %v664
    %v666 = vadd.f32 1.0, %v665
    %v667 = vmul.f32 %v658, %v658
    %v668 = vmul.f32 %v667, -0.00019511016
    %v669 = vadd.f32 %v668, 0.008332121
    %v670 = vmul.f32 %v667, %v669
    %v671 = vadd.f32 %v670, -0.16666654
    %v672 = vmul.f32 %v667, %v671
    %v673 = vadd.f32 %v672, 1.0
    %v674 = vmul.f32 %v673, %v658
    %vm675 = vweird.f32 %v65
    %v676 = vadd.s32 %v659, 3
    %v677 = vand.u32 %v676, 3
    %vm678 = vcmp.lt.s32.totalorder %v677, 2
    %vm679 = vcmp.eq.s32.totalorder %v677, 0
    %v680 = vxor.u32 %v674, 2147483648
    %v681 = vsel %vm679, %v666, %v680
    %vm682 = vcmp.eq.s32.totalorder %v677, 2
    %v683 = vxor.u32 %v666, 2147483648
    %v684 = vsel %vm682, %v683, %v674
    %v685 = vsel %vm678, %v681, %v684
    %v686 = vsel %vm675, nan, %v685
    %687 = vst [vmem:[#allocation2 + $0x10] sm:$0xff] %v531
    %688 = vst [vmem:[#allocation2 + $0x18] sm:$0xff] %v686
    // Predicated region
    $region10: #{tpu_custom_call.1} parent=1 // pred_check
      _
    $region11: #{tpu_custom_call.1} parent=1 // pred_check_branch
      %690 = sbr.rel (0) target = $region13
    $region12: #{tpu_custom_call.1} parent=1 // pred_region
      %692 = vsyncadd [#allocation3], 0
      %s693 = sshll.u32 [#allocation2], 4
      %s694 = int_to_ptr.vmem [resolvable:$true] %s693
      %s695 = sshll.u32 %s2, 4
      %s696 = int_to_ptr.hbm [resolvable:$true] %s695
      %701 = dma.vmem_to_hbm [thread:$0]  %s694, 512, %s696, [#allocation3], 256, 256, 16
    $region13: #{tpu_custom_call.1} parent=1 // pred_fallthru
      _
    // Predicated region
    $region14: #{tpu_custom_call.1} parent=1 // pred_check
      _
    $region15: #{tpu_custom_call.1} parent=1 // pred_check_branch
      %703 = sbr.rel (0) target = $region17
    $region16: #{tpu_custom_call.1} parent=1 // pred_region
      %705 = dma.done [#allocation3], 512
    $region17: #{tpu_custom_call.1} parent=1 // pred_fallthru
      _
    %706 = vsyncpa [#allocation3], 1

</llo_original>
